<compile_context>
chip_gen: v5e
topology: v5e:2x2
jax: 0.10.0
libtpu: 0.0.40
codegen_flags: <defaults>
</compile_context>

<pallas_src>
import functools

import jax
import jax.numpy as jnp
from jax.experimental import pallas as pl
from jax.experimental.pallas import tpu as pltpu


def _round_up(x: int, m: int) -> int:
    return ((x + m - 1) // m) * m


# ----------------------------------------------------------------------------
# Path 1: natural (B, D) layout.  VPU multiply + XLU lane reduce, column out.
# ----------------------------------------------------------------------------
def _linear_kernel(x_ref, w_ref, b_ref, o_ref):
    # x_ref: (tile_b, D) f32/bf16 VMEM (new tile each grid step, double-buffered)
    # w_ref: (1, D)      f32 VMEM (resident: constant index_map -> DMA'd once)
    # b_ref: (1,)        f32 SMEM scalar
    x = x_ref[...].astype(jnp.float32)
    w = w_ref[...]
    y = jnp.sum(x * w, axis=-1, keepdims=True)   # XLU lane reduce -> (tile_b, 1)
    o_ref[...] = y + b_ref[0]


@functools.partial(jax.jit, static_argnames=("tile_b", "x_in_bf16"))
def linear_regression_forward(x, weight, bias, *, tile_b=8192, x_in_bf16=False):
    """Equivalent of PyTorch nn.Linear(input_dim, 1)(x).

    x:      (B, D) float
    weight: (1, D) float (PyTorch layout; used as-is, no transpose)
    bias:   (1,)   float
    returns (B, 1) float32
    """
    x = x.astype(jnp.bfloat16 if x_in_bf16 else jnp.float32)
    weight = weight.astype(jnp.float32).reshape(1, -1)
    bias = bias.astype(jnp.float32).reshape(1)

    B, D = x.shape
    align = 16 if x_in_bf16 else 8               # sublane packing for bf16
    tile_b = max(align, min(tile_b, 16384))      # v7x-safe cap
    tile_b = min(_round_up(tile_b, align), _round_up(B, align))
    num_tiles = pl.cdiv(B, tile_b)               # ragged last tile handled by Pallas

    # VMEM budget: x block + out block both lane-pad to 128 lanes, f32 upper
    # bound, double-buffered each -> ~4 * tile_b * 512 B (+ headroom).
    vmem_budget = 4 * tile_b * 128 * 4 + (4 << 20)
    vmem_limit = min(max(vmem_budget, 32 << 20), 48 << 20)

    out = pl.pallas_call(
        _linear_kernel,
        out_shape=jax.ShapeDtypeStruct((B, 1), jnp.float32),
        grid_spec=pltpu.PrefetchScalarGridSpec(
            num_scalar_prefetch=0,
            grid=(num_tiles,),
            in_specs=[
                pl.BlockSpec((tile_b, D), lambda i: (i, 0)),         # x tile
                pl.BlockSpec((1, D), lambda i: (0, 0)),              # resident weight
                pl.BlockSpec(memory_space=pltpu.MemorySpace.SMEM),   # bias scalar
            ],
            out_specs=pl.BlockSpec((tile_b, 1), lambda i: (i, 0)),
        ),
        compiler_params=pltpu.CompilerParams(
            dimension_semantics=("parallel",),
            vmem_limit_bytes=int(vmem_limit),
        ),
    )(x, weight, bias)

    return out


# ----------------------------------------------------------------------------
# Path 2: transposed (D, B) layout for producers that already have x^T.
# Lane-dense loads/stores, no XLU reduce, (1, tile_b) row output.
# ----------------------------------------------------------------------------
def _linear_kernel_xt(xt_ref, w_ref, b_ref, o_ref):
    # xt_ref: (D, tile_b) f32 VMEM
    # w_ref:  (D,)        f32 SMEM
    # b_ref:  (1,)        f32 SMEM
    # o_ref:  (1, tile_b) f32 VMEM (lane-dense, unmasked stores)
    D = xt_ref.shape[0]
    acc = xt_ref[0:1, :] * w_ref[0]
    for d in range(1, D):                         # D is small & static: unrolled VPU FMAs
        acc = acc + xt_ref[d:d + 1, :] * w_ref[d]
    o_ref[...] = acc + b_ref[0]


@functools.partial(jax.jit, static_argnames=("tile_b",))
def linear_regression_forward_xt(x_t, weight, bias, *, tile_b=32768):
    """Same linear layer, but input is already transposed: x_t has shape (D, B)."""
    x_t = x_t.astype(jnp.float32)
    weight = weight.astype(jnp.float32).reshape(-1)   # (D,) -> SMEM
    bias = bias.astype(jnp.float32).reshape(1)

    D, B = x_t.shape
    tile_b = max(128, min(tile_b, 65536))
    if B <= tile_b:
        tile_b = B                                     # single block; full-dim block is legal
    else:
        tile_b = (tile_b // 128) * 128                 # lane-aligned tiles
    num_tiles = pl.cdiv(B, tile_b)

    # VMEM budget: x block pads 13->16 sublanes (64 B/row of lanes), out block
    # pads 1->8 sublanes; double-buffered -> ~192 * tile_b bytes total.
    vmem_budget = 192 * tile_b + (4 << 20)
    vmem_limit = min(max(vmem_budget, 32 << 20), 48 << 20)

    out = pl.pallas_call(
        _linear_kernel_xt,
        out_shape=jax.ShapeDtypeStruct((1, B), jnp.float32),
        grid_spec=pltpu.PrefetchScalarGridSpec(
            num_scalar_prefetch=0,
            grid=(num_tiles,),
            in_specs=[
                pl.BlockSpec((D, tile_b), lambda i: (0, i)),         # x^T tile
                pl.BlockSpec(memory_space=pltpu.MemorySpace.SMEM),   # weight scalars
                pl.BlockSpec(memory_space=pltpu.MemorySpace.SMEM),   # bias scalar
            ],
            out_specs=pl.BlockSpec((1, tile_b), lambda i: (0, i)),
        ),
        compiler_params=pltpu.CompilerParams(
            dimension_semantics=("parallel",),
            vmem_limit_bytes=int(vmem_limit),
        ),
    )(x_t, weight, bias)

    return out.reshape(B, 1)


if __name__ == "__main__":
    # Boston housing has 13 features; small batch for the check.
    input_dim = 13
    batch = 64

    key = jax.random.PRNGKey(0)
    kx, kw, kb, kx2 = jax.random.split(key, 4)

    x = jax.random.normal(kx, (batch, input_dim), dtype=jnp.float32)
    bound = 1.0 / (input_dim ** 0.5)
    weight = jax.random.uniform(kw, (1, input_dim), minval=-bound, maxval=bound,
                                dtype=jnp.float32)
    bias = jax.random.uniform(kb, (1,), minval=-bound, maxval=bound,
                              dtype=jnp.float32)
    ref = x @ weight.T + bias

    # 1) Default path: small batch collapses to a single block (no pipeline).
    out = jax.block_until_ready(linear_regression_forward(x, weight, bias))
    assert out.shape == (batch, 1)
    assert jnp.allclose(out, ref, atol=1e-5, rtol=1e-5)

    # 2) Multi-tile path with a ragged last tile (no jnp.pad copy of x).
    batch2 = 200
    x2 = jax.random.normal(kx2, (batch2, input_dim), dtype=jnp.float32)
    ref2 = x2 @ weight.T + bias
    out2 = jax.block_until_ready(
        linear_regression_forward(x2, weight, bias, tile_b=64))
    assert out2.shape == (batch2, 1)
    assert jnp.allclose(out2, ref2, atol=1e-5, rtol=1e-5)

    # 3) Lane-dense transposed path (caller supplies x^T).
    out3 = jax.block_until_ready(
        linear_regression_forward_xt(x2.T, weight, bias, tile_b=128))
    assert out3.shape == (batch2, 1)
    assert jnp.allclose(out3, ref2, atol=1e-5, rtol=1e-5)

    # 4) bf16-input option (v5e bandwidth saver); looser tolerance by design.
    out4 = jax.block_until_ready(
        linear_regression_forward(x, weight, bias, x_in_bf16=True))
    assert jnp.allclose(out4, ref, atol=5e-2, rtol=5e-2)

    print("KERNEL_OK")
</pallas_src>

<mosaic_0001>
module attributes {stable_mosaic.version = 11 : i64} {
  func.func @_linear_kernel(%arg0: i32, %arg1: memref<64x13xf32, #tpu.memory_space<vmem>>, %arg2: memref<1x13xf32, #tpu.memory_space<vmem>>, %arg3: memref<1xf32, #tpu.memory_space<smem>>, %arg4: memref<64x1xf32, #tpu.memory_space<vmem>>) attributes {dimension_semantics = [#tpu.dimension_semantics<parallel>], iteration_bounds = array<i64: 1>, scalar_prefetch = 0 : i64, scratch_operands = 0 : i64, tpu.core_type = #tpu.core_type<tc>, window_params = [{transform_indices = @transform_0, window_bounds = array<i64: 64, 13>}, {pipeline_mode = #tpu.pipeline_mode<synchronous>, transform_indices = @transform_1, window_bounds = array<i64: 1, 13>}, {transform_indices = @transform_2, window_bounds = array<i64: 1>}, {transform_indices = @transform_3, window_bounds = array<i64: 64, 1>}]} {
    %c0 = arith.constant 0 : index
    %c0_0 = arith.constant 0 : index
    %0 = vector.load %arg1[%c0, %c0_0] : memref<64x13xf32, #tpu.memory_space<vmem>>, vector<64x13xf32>
    %c0_1 = arith.constant 0 : index
    %c0_2 = arith.constant 0 : index
    %1 = vector.load %arg2[%c0_1, %c0_2] : memref<1x13xf32, #tpu.memory_space<vmem>>, vector<1x13xf32>
    %2 = vector.broadcast %1 : vector<1x13xf32> to vector<64x13xf32>
    %3 = arith.mulf %0, %2 : vector<64x13xf32>
    %cst = arith.constant dense<0.000000e+00> : vector<64xf32>
    %4 = vector.multi_reduction <add>, %3, %cst [1] : vector<64x13xf32> to vector<64xf32>
    %5 = vector.shape_cast %4 : vector<64xf32> to vector<64x1xf32>
    %c0_3 = arith.constant 0 : index
    %6 = memref.load %arg3[%c0_3] : memref<1xf32, #tpu.memory_space<smem>>
    %7 = vector.broadcast %6 : f32 to vector<64x1xf32>
    %8 = arith.addf %5, %7 : vector<64x1xf32>
    %c0_4 = arith.constant 0 : index
    %c0_5 = arith.constant 0 : index
    %9 = vector.load %arg4[%c0_4, %c0_5] : memref<64x1xf32, #tpu.memory_space<vmem>>, vector<64x1xf32>
    tpu.vector_store %arg4[%c0_4, %c0_5], %8 {strides = array<i32>} : memref<64x1xf32, #tpu.memory_space<vmem>>, vector<64x1xf32>,
    return
  }
  func.func @transform_0(%arg0: i32) -> (i32, i32) {
    %c0_i32 = arith.constant 0 : i32
    %c0_i32_0 = arith.constant 0 : i32
    return %arg0, %c0_i32 : i32, i32
  }
  func.func @transform_1(%arg0: i32) -> (i32, i32) {
    %c0_i32 = arith.constant 0 : i32
    %c0_i32_0 = arith.constant 0 : i32
    %c0_i32_1 = arith.constant 0 : i32
    return %c0_i32, %c0_i32_0 : i32, i32
  }
  func.func @transform_2(%arg0: i32) -> i32 {
    %c0_i32 = arith.constant 0 : i32
    %c0_i32_0 = arith.constant 0 : i32
    return %c0_i32 : i32
  }
  func.func @transform_3(%arg0: i32) -> (i32, i32) {
    %c0_i32 = arith.constant 0 : i32
    %c0_i32_0 = arith.constant 0 : i32
    return %arg0, %c0_i32 : i32, i32
  }
}

</mosaic_0001>

<llo_original>
// kernel: linear_regression_forward.1
$region0: #{linear_regression_forward.1}
  #allocation0 [shape = 'u32[]', space=smem, size = 0x4, offset = 0x4, fixed_abs, tag = 'smem constant byte address 0x4 - core index']
  #allocation1 [shape = 'u32[72,128]{1,0:T(1,128)}', space=vmem, size = 0x9000, scoped, tag = 'internal scratch']
  #allocation2 [shape = 'f32[1]{0:T(128)S(6)}', space=smem, size = 0x200, scoped, tag = 'scoped memory for linear_regression_forward.1']
  %s0 = inlined_call_operand.vmem [shape: f32[64,13], index: 0, kind: input, shape index: {}]
  %s1 = inlined_call_operand.vmem [shape: f32[1,13], index: 1, kind: input, shape index: {}]
  %s2 = inlined_call_operand.<no memory space> [shape: f32[1], index: 2, kind: input, shape index: {}]
  %s3 = inlined_call_operand.vmem [shape: f32[64,1], index: 3, kind: output, shape index: {}]
  %s4 = sld [smem:[#allocation0]]
  $region22: #{linear_regression_forward.1} parent=0
    _
  %s6 = ssub.s32 1, %s4
  %s7 = scalar_select 0, %s6, %s4
  %8 = sst [smem:[#allocation2]] %s2
  // Predicated region
  $region2: #{linear_regression_forward.1} parent=0 // pred_check
    _
  $region3: #{linear_regression_forward.1} parent=0 // pred_check_branch
    %10 = sbr.rel (0) target = $region5
  $region4: #{linear_regression_forward.1} parent=0 // pred_region
    _
  $region5: #{linear_regression_forward.1} parent=0 // pred_fallthru
    _
  // Predicated region
  $region6: #{linear_regression_forward.1} parent=0 // pred_check
    _
  $region7: #{linear_regression_forward.1} parent=0 // pred_check_branch
    %12 = sbr.rel (0) target = $region9
  $region8: #{linear_regression_forward.1} parent=0 // pred_region
    _
  $region9: #{linear_regression_forward.1} parent=0 // pred_fallthru
    _
  // Predicated region
  $region10: #{linear_regression_forward.1} parent=0 // pred_check
    _
  $region11: #{linear_regression_forward.1} parent=0 // pred_check_branch
    %14 = sbr.rel (0) target = $region13
  $region12: #{linear_regression_forward.1} parent=0 // pred_region
    _
  $region13: #{linear_regression_forward.1} parent=0 // pred_fallthru
    _
  %v15 = vld [vmem:[%s0] sm:$0xff]
  %v16 = vld [vmem:[%s0 + $0x8] sm:$0xff]
  %v17 = vld [vmem:[%s0 + $0x10] sm:$0xff]
  %v18 = vld [vmem:[%s0 + $0x18] sm:$0xff]
  %v19 = vld [vmem:[%s0 + $0x20] sm:$0xff]
  %v20 = vld [vmem:[%s0 + $0x28] sm:$0xff]
  %v21 = vld [vmem:[%s0 + $0x30] sm:$0xff]
  %v22 = vld [vmem:[%s0 + $0x38] sm:$0xff]
  %v23 = vld [vmem:[%s1] sm:$0x1]
  %v25 = vperm.slane %v23, 0
  %v27 = vmul.f32 %v15, %v25
  %v28 = vmul.f32 %v16, %v25
  %v29 = vmul.f32 %v17, %v25
  %v30 = vmul.f32 %v18, %v25
  %v31 = vmul.f32 %v19, %v25
  %v32 = vmul.f32 %v20, %v25
  %v33 = vmul.f32 %v21, %v25
  %v34 = vmul.f32 %v22, %v25
  %vm35 = vcmask 105472
  %v36 = vsel %vm35, %v27, 0.0
  %37 = vadd.xlane.f32.xlu0 %v36
  %v38 = vpop.xlane.xlu0 %37
  %v39 = vsel %vm35, %v28, 0.0
  %40 = vadd.xlane.f32.xlu0 %v39
  %v41 = vpop.xlane.xlu0 %40
  %v42 = vsel %vm35, %v29, 0.0
  %43 = vadd.xlane.f32.xlu0 %v42
  %v44 = vpop.xlane.xlu0 %43
  %v45 = vsel %vm35, %v30, 0.0
  %46 = vadd.xlane.f32.xlu0 %v45
  %v47 = vpop.xlane.xlu0 %46
  %v48 = vsel %vm35, %v31, 0.0
  %49 = vadd.xlane.f32.xlu0 %v48
  %v50 = vpop.xlane.xlu0 %49
  %v51 = vsel %vm35, %v32, 0.0
  %52 = vadd.xlane.f32.xlu0 %v51
  %v53 = vpop.xlane.xlu0 %52
  %v54 = vsel %vm35, %v33, 0.0
  %55 = vadd.xlane.f32.xlu0 %v54
  %v56 = vpop.xlane.xlu0 %55
  %v57 = vsel %vm35, %v34, 0.0
  %58 = vadd.xlane.f32.xlu0 %v57
  %v59 = vpop.xlane.xlu0 %58
  %s60 = sld [smem:[#allocation2]]
  %v61 = vstv %s60
  %v62 = vadd.f32 %v38, %v61
  %v63 = vadd.f32 %v41, %v61
  %v64 = vadd.f32 %v44, %v61
  %v65 = vadd.f32 %v47, %v61
  %v66 = vadd.f32 %v50, %v61
  %v67 = vadd.f32 %v53, %v61
  %v68 = vadd.f32 %v56, %v61
  %v69 = vadd.f32 %v59, %v61
  %vm70 = vcmask 7168
  %71 = vst.msk [vmem:[%s3] sm:$0xff] %vm70, %v62
  %72 = vst.msk [vmem:[%s3 + $0x8] sm:$0xff] %vm70, %v63
  %73 = vst.msk [vmem:[%s3 + $0x10] sm:$0xff] %vm70, %v64
  %74 = vst.msk [vmem:[%s3 + $0x18] sm:$0xff] %vm70, %v65
  %75 = vst.msk [vmem:[%s3 + $0x20] sm:$0xff] %vm70, %v66
  %76 = vst.msk [vmem:[%s3 + $0x28] sm:$0xff] %vm70, %v67
  %77 = vst.msk [vmem:[%s3 + $0x30] sm:$0xff] %vm70, %v68
  %78 = vst.msk [vmem:[%s3 + $0x38] sm:$0xff] %vm70, %v69
  // Predicated region
  $region14: #{linear_regression_forward.1} parent=0 // pred_check
    _
  $region15: #{linear_regression_forward.1} parent=0 // pred_check_branch
    %80 = sbr.rel (0) target = $region17
  $region16: #{linear_regression_forward.1} parent=0 // pred_region
    _
  $region17: #{linear_regression_forward.1} parent=0 // pred_fallthru
    _
  // Predicated region
  $region18: #{linear_regression_forward.1} parent=0 // pred_check
    _
  $region19: #{linear_regression_forward.1} parent=0 // pred_check_branch
    %82 = sbr.rel (0) target = $region21
  $region20: #{linear_regression_forward.1} parent=0 // pred_region
    _
  $region21: #{linear_regression_forward.1} parent=0 // pred_fallthru
    _

</llo_original>
